<compile_context>
chip_gen: v5e
topology: v5e:2x2
jax: 0.10.0
libtpu: 0.0.40
codegen_flags: <defaults>
</compile_context>

<pallas_src>
import functools

import jax
import jax.numpy as jnp
from jax.experimental import pallas as pl
from jax.experimental.pallas import tpu as pltpu


def _vq_kernel(z_ref, e_ref, e2h_ref, zq_ref, idx_ref, hist_ref, *, n_valid_cols):
    """One (batch, lane-tile) step of the vector quantizer.

    z_ref    : (1, C, tn)      channels-on-sublanes tile of z
    e_ref    : (K_pad, C)      padded codebook, resident across the grid
    e2h_ref  : (K_pad, 1)      0.5*||e_k||^2 (huge for padding rows)
    zq_ref   : (1, C, tn)      quantized tile (caller dtype)
    idx_ref  : (1, 1, tn)      argmin indices, lane-dense row
    hist_ref : (1, 1, K_pad)   per-tile codeword histogram, lane-dense row
    """
    z = z_ref[0].astype(jnp.float32)                    # (C, tn)
    e = e_ref[...]                                      # (K_pad, C)
    e_f32 = e.astype(jnp.float32)
    k_pad = e.shape[0]
    tn = z.shape[1]

    # argmin_k ||z_n - e_k||^2 == argmax_k (<e_k, z_n> - 0.5*||e_k||^2);
    # ||z_n||^2 is a per-lane constant and is dropped (perf-review item 2).
    ze = jax.lax.dot_general(e_f32, z, (((1,), (0,)), ((), ())),
                             preferred_element_type=jnp.float32)     # (K_pad, tn)
    score = ze - e2h_ref[...]                                        # (K_pad, tn)

    # argmax over sublanes with first-occurrence tie-break (matches torch.argmin).
    row = jax.lax.broadcasted_iota(jnp.int32, score.shape, 0)        # (K_pad, tn)
    best = jnp.max(score, axis=0, keepdims=True)                     # (1, tn)
    idx = jnp.min(jnp.where(score == best, row, k_pad),
                  axis=0, keepdims=True)                             # (1, tn)
    idx_ref[0] = idx.astype(jnp.int32)

    # One-hot stays in VMEM only; codebook lookup as an MXU contraction over K.
    hit = row == idx                                                 # (K_pad, tn)
    zq = jax.lax.dot_general(e, hit.astype(e.dtype), (((0,), (0,)), ((), ())),
                             preferred_element_type=jnp.float32)     # (C, tn)
    zq_ref[0] = zq.astype(zq_ref.dtype)

    # Lane-valid mask for columns past the true spatial extent (tile padding).
    col = (pl.program_id(1) * tn
           + jax.lax.broadcasted_iota(jnp.int32, (1, tn), 1))        # (1, tn)
    valid = (col < n_valid_cols).astype(jnp.float32)                 # (1, tn)
    # Per-tile histogram on the MXU: (1, tn) x (K_pad, tn)^T -> (1, K_pad).
    hist = jax.lax.dot_general(valid, hit.astype(jnp.float32),
                               (((1,), (1,)), ((), ())),
                               preferred_element_type=jnp.float32)
    hist_ref[0] = hist


def _tn_cap():
    """Lane-tile cap: 2048 on 128-MiB-VMEM parts, 1024 on v7x (64 MiB / 2 TCs)."""
    try:
        info = pltpu.get_tpu_info()
        vmem = getattr(info, "vmem_capacity_bytes", 128 * 1024 * 1024)
    except Exception:  # conservative default works on every generation
        return 1024
    return 1024 if vmem <= 64 * 1024 * 1024 else 2048


def _choose_tn(n_cols, k_pad, cap, vmem_budget_bytes=12 * 1024 * 1024):
    """Lane tile: as wide as ~6 live (K_pad, tn) f32 intermediates allow."""
    lanes = vmem_budget_bytes // (k_pad * 4 * 6)
    lanes = max(128, (lanes // 128) * 128)
    tn = min(cap, lanes)
    n_up = ((n_cols + 127) // 128) * 128
    tn = min(tn, n_up)
    # TODO(synk): for very large codebooks (K >= ~4096), chunk K inside the
    # kernel (fori_loop over codebook slabs carrying running max/argmax)
    # instead of letting the (K_pad, tn) intermediates bound tn.
    return max(128, tn)


def _even_grid_tn(b, n_cols, tn):
    """Prefer an even total step count (v7x has 2 TCs); never shrink below 256
    or below half the original tile to get it."""
    if (b * pl.cdiv(n_cols, tn)) % 2 == 0:
        return tn
    cand = tn - 128
    floor = max(256, tn // 2)
    while cand >= floor:
        if (b * pl.cdiv(n_cols, cand)) % 2 == 0:
            return cand
        cand -= 128
    return tn


def vq_pallas(z3, emb, *, tn=None):
    """z3: (b, C, n_cols) channels-on-sublanes view of z.

    Returns (z_q3 (b, C, n_cols) in z3.dtype, indices (b*n_cols,) int32,
             per-codeword counts (K,) f32).
    """
    b, C, n_cols = z3.shape
    K, _ = emb.shape
    k_pad = max(128, ((K + 127) // 128) * 128)

    if tn is None:
        tn = _choose_tn(n_cols, k_pad, _tn_cap())
        tn = _even_grid_tn(b, n_cols, tn)
    n_tiles = pl.cdiv(n_cols, tn)
    n_pad = n_tiles * tn
    if n_pad != n_cols:
        z3 = jnp.pad(z3, ((0, 0), (0, 0), (0, n_pad - n_cols)))

    emb_f = emb.astype(jnp.float32)
    # Padded codebook rows are zero; their 0.5*||e||^2 entry is huge, so their
    # score is -huge and they can never win the argmax.
    e_pad = jnp.pad(emb, ((0, k_pad - K), (0, 0)))
    e2_half = 0.5 * jnp.sum(emb_f * emb_f, axis=1)
    e2_half = jnp.pad(e2_half, (0, k_pad - K),
                      constant_values=jnp.float32(1e30))[:, None]     # (K_pad, 1)

    itemsize = z3.dtype.itemsize
    flops = 4 * b * n_pad * k_pad * C                    # distance + lookup matmuls
    bytes_accessed = (b * n_pad * C * itemsize * 2       # z read + zq write
                      + k_pad * C * e_pad.dtype.itemsize
                      + b * n_tiles * (tn * 4 + k_pad * 4))

    kernel = functools.partial(_vq_kernel, n_valid_cols=n_cols)

    zq, idx, hist = pl.pallas_call(
        kernel,
        out_shape=(
            jax.ShapeDtypeStruct((b, C, n_pad), z3.dtype),        # z_q tiles
            jax.ShapeDtypeStruct((b, n_tiles, tn), jnp.int32),    # indices
            jax.ShapeDtypeStruct((b, n_tiles, k_pad), jnp.float32),  # histograms
        ),
        grid_spec=pltpu.PrefetchScalarGridSpec(
            num_scalar_prefetch=0,
            grid=(b, n_tiles),
            in_specs=[
                pl.BlockSpec((1, C, tn), lambda bi, ni: (bi, 0, ni)),   # z tile
                pl.BlockSpec((k_pad, C), lambda bi, ni: (0, 0)),        # codebook
                pl.BlockSpec((k_pad, 1), lambda bi, ni: (0, 0)),        # 0.5*||e||^2
            ],
            out_specs=[
                pl.BlockSpec((1, C, tn), lambda bi, ni: (bi, 0, ni)),
                pl.BlockSpec((1, 1, tn), lambda bi, ni: (bi, ni, 0)),
                pl.BlockSpec((1, 1, k_pad), lambda bi, ni: (bi, ni, 0)),
            ],
        ),
        compiler_params=pltpu.CompilerParams(
            dimension_semantics=("parallel", "parallel"),  # no cross-step carry
            vmem_limit_bytes=32 * 1024 * 1024,             # >v5e default, v7x-safe
        ),
        cost_estimate=pl.CostEstimate(
            flops=int(flops), transcendentals=0, bytes_accessed=int(bytes_accessed)),
    )(z3, e_pad, e2_half)

    zq = zq[:, :, :n_cols]                                           # (b, C, n_cols)
    idx = idx.reshape(b, n_pad)[:, :n_cols].reshape(-1)              # (b*n_cols,)
    counts = jnp.sum(hist, axis=(0, 1))[:K]                          # (K,)
    return zq, idx, counts


def vector_quantizer_forward(z, embedding_weight, beta, *, return_min_encodings=False):
    """Matches VectorQuantizer.forward for z of shape (b, c, h, w, d)."""
    b, c, h, w, dd = z.shape
    K = embedding_weight.shape[0]
    n_cols = h * w * dd
    N = b * n_cols

    # 'b c h w d' -> (b, c, h*w*d): free reshape, channels land on sublanes and
    # the big spatial axis on lanes inside the kernel.  Column order matches the
    # module's '(b h w d)' flattening exactly.
    z3 = z.reshape(b, c, n_cols)

    zq3, idx, counts = vq_pallas(z3, embedding_weight)
    z_q = zq3.reshape(b, c, h, w, dd).astype(z.dtype)

    # mean(d) analytically from means (exact in exact arithmetic, better
    # conditioned than differencing K*sum / N*sum aggregates).
    zf32 = z.astype(jnp.float32)
    ef32 = embedding_weight.astype(jnp.float32)
    mean_z = jnp.mean(zf32.reshape(b, c, n_cols), axis=(0, 2))       # (C,)
    mean_e = jnp.mean(ef32, axis=0)                                  # (C,)
    mean_distance = (jnp.sum(zf32 * zf32) / N
                     + jnp.sum(ef32 * ef32) / K
                     - 2.0 * jnp.dot(mean_z, mean_e))

    # Forward value of the commitment loss (detach() only affects gradients).
    loss = jnp.mean((jax.lax.stop_gradient(z_q) - z) ** 2) + beta * jnp.mean(
        (z_q - jax.lax.stop_gradient(z)) ** 2)

    # Straight-through estimator.
    z_q_out = z + jax.lax.stop_gradient(z_q - z)

    # Perplexity from the in-kernel histogram (no (N, K) one-hot HBM traffic).
    e_mean = counts / N
    perplexity = jnp.exp(-jnp.sum(e_mean * jnp.log(e_mean + 1e-10)))

    info = {
        "perplexity": perplexity,
        "min_encoding_indices": idx[:, None],
        "mean_distance": mean_distance,
        # (N, K) one-hot only on request: it reintroduces exactly the HBM
        # traffic the kernel is designed to avoid.
        "min_encodings": (jax.nn.one_hot(idx, K, dtype=jnp.float32)
                          if return_min_encodings else None),
    }
    return z_q_out, loss, info


def _reference_forward(z, emb, beta):
    """Pure-JAX reference mirroring the PyTorch module (forward values)."""
    b, c, h, w, dd = z.shape
    K = emb.shape[0]
    zf = jnp.transpose(z, (0, 2, 3, 4, 1)).reshape(-1, c)
    d = (jnp.sum(zf ** 2, axis=1, keepdims=True) + jnp.sum(emb ** 2, axis=1)
         - 2.0 * zf @ emb.T)
    mean_distance = jnp.mean(d)
    idx = jnp.argmin(d, axis=1)
    enc = jax.nn.one_hot(idx, K, dtype=jnp.float32)
    zq = (enc @ emb).reshape(b, h, w, dd, c).transpose(0, 4, 1, 2, 3)
    loss = jnp.mean((zq - z) ** 2) + beta * jnp.mean((zq - z) ** 2)
    e_mean = jnp.mean(enc, axis=0)
    perplexity = jnp.exp(-jnp.sum(e_mean * jnp.log(e_mean + 1e-10)))
    return zq, loss, perplexity, idx, mean_distance


if __name__ == "__main__":
    # Small shapes consistent with the module: (b, c, h, w, d) = (2, 8, 4, 4, 5),
    # codebook_size = 64, emb_dim = 8, beta = 0.25.
    # n_cols = 80 per batch element exercises the lane-padded path (tn=128) and
    # the in-kernel masking of padded lanes in the histogram; grid = (2, 1).
    codebook_size, emb_dim, beta = 64, 8, 0.25
    b, h, w, dd = 2, 4, 4, 5

    key = jax.random.PRNGKey(0)
    kz, ke = jax.random.split(key)
    z = jax.random.normal(kz, (b, emb_dim, h, w, dd), dtype=jnp.float32)
    # Deterministic init: uniform(-1/K, 1/K), like the PyTorch module.
    embedding_weight = jax.random.uniform(
        ke, (codebook_size, emb_dim), dtype=jnp.float32,
        minval=-1.0 / codebook_size, maxval=1.0 / codebook_size)

    z_q, loss, info = vector_quantizer_forward(
        z, embedding_weight, beta, return_min_encodings=True)
    jax.block_until_ready((z_q, loss, info["perplexity"],
                           info["min_encoding_indices"], info["mean_distance"],
                           info["min_encodings"]))

    # Correctness check against a pure-JAX reference.
    zq_ref, loss_ref, perp_ref, idx_ref, md_ref = _reference_forward(
        z, embedding_weight, beta)
    assert jnp.allclose(z_q, zq_ref, atol=1e-5, rtol=1e-5)
    assert jnp.allclose(loss, loss_ref, atol=1e-5, rtol=1e-5)
    assert jnp.allclose(info["perplexity"], perp_ref, atol=1e-5, rtol=1e-5)
    assert jnp.allclose(info["mean_distance"], md_ref, atol=1e-4, rtol=1e-4)
    assert jnp.array_equal(info["min_encoding_indices"][:, 0], idx_ref)
    assert jnp.allclose(info["min_encodings"],
                        jax.nn.one_hot(idx_ref, codebook_size, dtype=jnp.float32))

    print("KERNEL_OK")
</pallas_src>

<mosaic_0001>
module attributes {stable_mosaic.version = 11 : i64} {
  func.func @_vq_kernel(%arg0: i32, %arg1: i32, %arg2: memref<1x8x128xf32, #tpu.memory_space<vmem>>, %arg3: memref<128x8xf32, #tpu.memory_space<vmem>>, %arg4: memref<128x1xf32, #tpu.memory_space<vmem>>, %arg5: memref<1x8x128xf32, #tpu.memory_space<vmem>>, %arg6: memref<1x1x128xi32, #tpu.memory_space<vmem>>, %arg7: memref<1x1x128xf32, #tpu.memory_space<vmem>>) attributes {dimension_semantics = [#tpu.dimension_semantics<parallel>, #tpu.dimension_semantics<parallel>], iteration_bounds = array<i64: 2, 1>, scalar_prefetch = 0 : i64, scratch_operands = 0 : i64, tpu.core_type = #tpu.core_type<tc>, window_params = [{transform_indices = @transform_0, window_bounds = array<i64: 1, 8, 128>}, {pipeline_mode = #tpu.pipeline_mode<synchronous>, transform_indices = @transform_1, window_bounds = array<i64: 128, 8>}, {pipeline_mode = #tpu.pipeline_mode<synchronous>, transform_indices = @transform_2, window_bounds = array<i64: 128, 1>}, {transform_indices = @transform_3, window_bounds = array<i64: 1, 8, 128>}, {transform_indices = @transform_4, window_bounds = array<i64: 1, 1, 128>}, {transform_indices = @transform_5, window_bounds = array<i64: 1, 1, 128>}]} {
    %c0 = arith.constant 0 : index
    %c0_0 = arith.constant 0 : index
    %c0_1 = arith.constant 0 : index
    %0 = vector.load %arg2[%c0, %c0_0, %c0_1] : memref<1x8x128xf32, #tpu.memory_space<vmem>>, vector<1x8x128xf32>
    %1 = vector.shape_cast %0 : vector<1x8x128xf32> to vector<8x128xf32>
    %c0_2 = arith.constant 0 : index
    %c0_3 = arith.constant 0 : index
    %2 = vector.load %arg3[%c0_2, %c0_3] : memref<128x8xf32, #tpu.memory_space<vmem>>, vector<128x8xf32>
    %cst = arith.constant dense<0.000000e+00> : vector<128x128xf32>
    %3 = tpu.matmul %2, %1, %cst {dimension_numbers = #tpu.dot_dimension_numbers<[1], [0], [0], [1], [0, 0, 1, 1], [], []>} : vector<128x8xf32>, vector<8x128xf32>, vector<128x128xf32> -> vector<128x128xf32>
    %c0_4 = arith.constant 0 : index
    %c0_5 = arith.constant 0 : index
    %4 = vector.load %arg4[%c0_4, %c0_5] : memref<128x1xf32, #tpu.memory_space<vmem>>, vector<128x1xf32>
    %5 = vector.broadcast %4 : vector<128x1xf32> to vector<128x128xf32>
    %6 = arith.subf %3, %5 : vector<128x128xf32>
    %7 = tpu.iota {dimensions = array<i32: 0>} : vector<128x128xi32>
    %cst_6 = arith.constant dense<0xFF800000> : vector<128xf32>
    %8 = vector.multi_reduction <maximumf>, %6, %cst_6 [0] : vector<128x128xf32> to vector<128xf32>
    %9 = vector.shape_cast %8 : vector<128xf32> to vector<1x128xf32>
    %10 = vector.broadcast %9 : vector<1x128xf32> to vector<128x128xf32>
    %11 = arith.cmpf oeq, %6, %10 : vector<128x128xf32>
    %c128_i32 = arith.constant 128 : i32
    %12 = vector.broadcast %c128_i32 : i32 to vector<128x128xi32>
    %13 = arith.select %11, %7, %12 : vector<128x128xi1>, vector<128x128xi32>
    %cst_7 = arith.constant dense<2147483647> : vector<128xi32>
    %14 = vector.multi_reduction <minsi>, %13, %cst_7 [0] : vector<128x128xi32> to vector<128xi32>
    %15 = vector.shape_cast %14 : vector<128xi32> to vector<1x128xi32>
    %c0_8 = arith.constant 0 : index
    %c0_9 = arith.constant 0 : index
    %c0_10 = arith.constant 0 : index
    %16 = vector.load %arg6[%c0_8, %c0_9, %c0_10] : memref<1x1x128xi32, #tpu.memory_space<vmem>>, vector<1x1x128xi32>
    %17 = vector.shape_cast %16 : vector<1x1x128xi32> to vector<1x128xi32>
    %18 = vector.shape_cast %15 : vector<1x128xi32> to vector<1x1x128xi32>
    tpu.vector_store %arg6[%c0_8, %c0_9, %c0_10], %18 {strides = array<i32>} : memref<1x1x128xi32, #tpu.memory_space<vmem>>, vector<1x1x128xi32>,
    %19 = vector.broadcast %15 : vector<1x128xi32> to vector<128x128xi32>
    %20 = arith.cmpi eq, %7, %19 : vector<128x128xi32>
    %21 = arith.extui %20 : vector<128x128xi1> to vector<128x128xi32>
    %22 = arith.sitofp %21 : vector<128x128xi32> to vector<128x128xf32>
    %cst_11 = arith.constant dense<0.000000e+00> : vector<8x128xf32>
    %23 = tpu.matmul %2, %22, %cst_11 {dimension_numbers = #tpu.dot_dimension_numbers<[0], [0], [1], [1], [0, 1, 1, 1], [], []>} : vector<128x8xf32>, vector<128x128xf32>, vector<8x128xf32> -> vector<8x128xf32>
    %c0_12 = arith.constant 0 : index
    %c0_13 = arith.constant 0 : index
    %c0_14 = arith.constant 0 : index
    %24 = vector.load %arg5[%c0_12, %c0_13, %c0_14] : memref<1x8x128xf32, #tpu.memory_space<vmem>>, vector<1x8x128xf32>
    %25 = vector.shape_cast %24 : vector<1x8x128xf32> to vector<8x128xf32>
    %26 = vector.shape_cast %23 : vector<8x128xf32> to vector<1x8x128xf32>
    tpu.vector_store %arg5[%c0_12, %c0_13, %c0_14], %26 {strides = array<i32>} : memref<1x8x128xf32, #tpu.memory_space<vmem>>, vector<1x8x128xf32>,
    %c128_i32_15 = arith.constant 128 : i32
    %27 = arith.muli %arg1, %c128_i32_15 : i32
    %28 = tpu.iota {dimensions = array<i32: 1>} : vector<1x128xi32>
    %29 = vector.broadcast %27 : i32 to vector<1x128xi32>
    %30 = arith.addi %29, %28 : vector<1x128xi32>
    %c80_i32 = arith.constant 80 : i32
    %31 = vector.broadcast %c80_i32 : i32 to vector<1x128xi32>
    %32 = arith.cmpi slt, %30, %31 : vector<1x128xi32>
    %33 = arith.extui %32 : vector<1x128xi1> to vector<1x128xi32>
    %34 = arith.sitofp %33 : vector<1x128xi32> to vector<1x128xf32>
    %35 = arith.extui %20 : vector<128x128xi1> to vector<128x128xi32>
    %36 = arith.sitofp %35 : vector<128x128xi32> to vector<128x128xf32>
    %cst_16 = arith.constant dense<0.000000e+00> : vector<1x128xf32>
    %37 = tpu.matmul %34, %36, %cst_16 {dimension_numbers = #tpu.dot_dimension_numbers<[1], [1], [0], [0], [0, 0, 1, 0], [], []>} : vector<1x128xf32>, vector<128x128xf32>, vector<1x128xf32> -> vector<1x128xf32>
    %c0_17 = arith.constant 0 : index
    %c0_18 = arith.constant 0 : index
    %c0_19 = arith.constant 0 : index
    %38 = vector.load %arg7[%c0_17, %c0_18, %c0_19] : memref<1x1x128xf32, #tpu.memory_space<vmem>>, vector<1x1x128xf32>
    %39 = vector.shape_cast %38 : vector<1x1x128xf32> to vector<1x128xf32>
    %40 = vector.shape_cast %37 : vector<1x128xf32> to vector<1x1x128xf32>
    tpu.vector_store %arg7[%c0_17, %c0_18, %c0_19], %40 {strides = array<i32>} : memref<1x1x128xf32, #tpu.memory_space<vmem>>, vector<1x1x128xf32>,
    return
  }
  func.func @transform_0(%arg0: i32, %arg1: i32) -> (i32, i32, i32) {
    %c0_i32 = arith.constant 0 : i32
    %c0_i32_0 = arith.constant 0 : i32
    return %arg0, %c0_i32, %arg1 : i32, i32, i32
  }
  func.func @transform_1(%arg0: i32, %arg1: i32) -> (i32, i32) {
    %c0_i32 = arith.constant 0 : i32
    %c0_i32_0 = arith.constant 0 : i32
    %c0_i32_1 = arith.constant 0 : i32
    return %c0_i32, %c0_i32_0 : i32, i32
  }
  func.func @transform_2(%arg0: i32, %arg1: i32) -> (i32, i32) {
    %c0_i32 = arith.constant 0 : i32
    %c0_i32_0 = arith.constant 0 : i32
    %c0_i32_1 = arith.constant 0 : i32
    return %c0_i32, %c0_i32_0 : i32, i32
  }
  func.func @transform_3(%arg0: i32, %arg1: i32) -> (i32, i32, i32) {
    %c0_i32 = arith.constant 0 : i32
    %c0_i32_0 = arith.constant 0 : i32
    return %arg0, %c0_i32, %arg1 : i32, i32, i32
  }
  func.func @transform_4(%arg0: i32, %arg1: i32) -> (i32, i32, i32) {
    %c0_i32 = arith.constant 0 : i32
    %c0_i32_0 = arith.constant 0 : i32
    return %arg0, %arg1, %c0_i32 : i32, i32, i32
  }
  func.func @transform_5(%arg0: i32, %arg1: i32) -> (i32, i32, i32) {
    %c0_i32 = arith.constant 0 : i32
    %c0_i32_0 = arith.constant 0 : i32
    return %arg0, %arg1, %c0_i32 : i32, i32, i32
  }
}

</mosaic_0001>

<llo_original>
// kernel: tpu_custom_call.1
$region0: #{tpu_custom_call.1}
  #allocation0 [shape = 'u32[]', space=smem, size = 0x4, offset = 0x4, fixed_abs, tag = 'smem constant byte address 0x4 - core index']
  #allocation1 [shape = 'u32[72,128]{1,0:T(1,128)}', space=vmem, size = 0x9000, scoped, tag = 'internal scratch']
  %s0 = inlined_call_operand.vmem [shape: f32[2,8,128], index: 0, kind: input, shape index: {}]
  %s1 = inlined_call_operand.vmem [shape: f32[128,8], index: 1, kind: input, shape index: {}]
  %s2 = inlined_call_operand.vmem [shape: f32[128,1], index: 2, kind: input, shape index: {}]
  %s3 = inlined_call_operand.hbm [shape: f32[2,8,128], index: 3, kind: output, shape index: {0}]
  %s4 = inlined_call_operand.hbm [shape: s32[2,1,128], index: 4, kind: output, shape index: {1}]
  %s5 = inlined_call_operand.hbm [shape: f32[2,1,128], index: 5, kind: output, shape index: {2}]
  %6 = xla_tuple %s3, %s4, %s5
  %s7 = sld [smem:[#allocation0]]
  $region61: #{tpu_custom_call.1} parent=0
    _
  %s9 = ssub.s32 1, %s7
  %s10 = scalar_select 0, %s9, %s7
  $region1: #{tpu_custom_call.1} parent=0
    #allocation2 [shape = 'u8[8192]{0}', space=vmem, size = 0x2000, scoped, tag = 'output window, operand 0']
    #allocation3 [shape = 's32[2]{0}', space=sflag, size = 0x8, scoped, tag = 'scoped memory for tpu_custom_call.1']
    #allocation4 [shape = 'u8[1024]{0}', space=vmem, size = 0x400, scoped, tag = 'output window, operand 1']
    #allocation5 [shape = 's32[2]{0}', space=sflag, size = 0x8, scoped, tag = 'scoped memory for tpu_custom_call.1']
    #allocation6 [shape = 'u8[1024]{0}', space=vmem, size = 0x400, scoped, tag = 'output window, operand 2']
    %11 = vsyncpa [#allocation3], 0
    %s12 = scalar_lea.sflag [#allocation3], 1
    %13 = vsyncpa %s12, 0
    %14 = vsyncpa [#allocation5], 0
    %s15 = scalar_lea.sflag [#allocation5], 1
    %16 = vsyncpa %s15, 0
    loop: start=0, step=1, limit=4
    $region2: #{tpu_custom_call.1} parent=1 // loop_pre_header
      _
    $region3: #{tpu_custom_call.1} parent=1 // loop_header
      %s18 = sphi 0, %s22
      %p19 = scmp.ge.s32.totalorder %s18, 4
      %s25 = sphi 0, %s37
      %s26 = sphi 0, %s33
      %s27 = sphi 0, %s25
      %s28 = sphi 0, %s26
      %s29 = sphi 0, %s27
      %s30 = sphi 0, %s28
      %s42 = sphi 0, %s44
      %s45 = sphi 0, %s42
      %s46 = sphi 0, %s45
      %s62 = sphi 0, %s46
      %s66 = sphi 0, %s66
      %s68 = sphi 0, %s66
      %s69 = sphi 0, %s68
      %s83 = sphi 0, %s69
      %s87 = sphi 0, %s87
      %s89 = sphi 0, %s87
      %s90 = sphi 0, %s89
      %s104 = sphi 0, %s90
      %s112 = sphi 0, %s114
      %s115 = sphi 0, %s112
      %s116 = sphi 0, %s115
      %s132 = sphi 0, %s116
      %s140 = sphi 0, %s142
      %s143 = sphi 0, %s140
      %s144 = sphi 0, %s143
      %s160 = sphi 0, %s144
      %s168 = sphi 0, %s170
      %s171 = sphi 0, %s168
      %s172 = sphi 0, %s171
      %s188 = sphi 0, %s172
    $region4: #{tpu_custom_call.1} parent=1 // loop_header_branch
      %21 = sbr.rel (%p19) target = $region8
    $region5: #{tpu_custom_call.1} parent=1 // loop_body
      %s23 = ssub.s32 %s18, 1
      %s24 = ssub.s32 %s18, 2
      %s31 = sadd.s32 1, %s26
      %p32 = scmp.ge.s32.totalorder %s31, 1
      %s33 = scalar_select %p32, 0, %s31
      %s34 = sadd.s32 1, %s25
      %s35 = scalar_select %p32, %s34, %s25
      %p36 = scmp.ge.s32.totalorder %s35, 2
      %s37 = scalar_select %p36, 0, %s35
      %s38 = ssub.s32 %s25, %s37
      %s39 = ssub.s32 %s26, %s33
      %s40 = sor.u32 %s38, %s39
      %p41 = scmp.eq.s32.totalorder %s40, 0
      %s43 = sadd.s32 %s42, 1
      %s44 = scalar_select %p41, %s42, %s43
      %p47 = pneg %p41
      %p48 = scmp.eq.s32.totalorder %s18, 1
      %p49 = por %p47, %p48
      %p50 = scmp.ne.s32.totalorder %s42, %s45
      %p51 = scmp.eq.s32.totalorder %s18, 0
      %p52 = por %p50, %p51
      %p53 = scmp.ne.s32.totalorder %s42, %s45
      %p54 = scmp.eq.s32.totalorder %s23, 1
      %p55 = por %p53, %p54
      %p56 = scmp.ne.s32.totalorder %s45, %s46
      %p57 = scmp.eq.s32.totalorder %s23, 0
      %p58 = por %p56, %p57
      %p59 = scmp.ne.s32.totalorder %s45, %s46
      %p60 = scmp.eq.s32.totalorder %s24, 1
      %p61 = por %p59, %p60
      %p63 = scmp.ne.s32.totalorder %s46, %s62
      %p64 = scmp.eq.s32.totalorder %s24, 0
      %p65 = por %p63, %p64
      %s67 = sadd.s32 %s66, 1
      %p70 = scmp.eq.s32.totalorder %s18, 1
      %p71 = scmp.ne.s32.totalorder %s66, %s68
      %p72 = scmp.eq.s32.totalorder %s18, 0
      %p73 = por %p71, %p72
      %p74 = scmp.ne.s32.totalorder %s66, %s68
      %p75 = scmp.eq.s32.totalorder %s23, 1
      %p76 = por %p74, %p75
      %p77 = scmp.ne.s32.totalorder %s68, %s69
      %p78 = scmp.eq.s32.totalorder %s23, 0
      %p79 = por %p77, %p78
      %p80 = scmp.ne.s32.totalorder %s68, %s69
      %p81 = scmp.eq.s32.totalorder %s24, 1
      %p82 = por %p80, %p81
      %p84 = scmp.ne.s32.totalorder %s69, %s83
      %p85 = scmp.eq.s32.totalorder %s24, 0
      %p86 = por %p84, %p85
      %s88 = sadd.s32 %s87, 1
      %p91 = scmp.eq.s32.totalorder %s18, 1
      %p92 = scmp.ne.s32.totalorder %s87, %s89
      %p93 = scmp.eq.s32.totalorder %s18, 0
      %p94 = por %p92, %p93
      %p95 = scmp.ne.s32.totalorder %s87, %s89
      %p96 = scmp.eq.s32.totalorder %s23, 1
      %p97 = por %p95, %p96
      %p98 = scmp.ne.s32.totalorder %s89, %s90
      %p99 = scmp.eq.s32.totalorder %s23, 0
      %p100 = por %p98, %p99
      %p101 = scmp.ne.s32.totalorder %s89, %s90
      %p102 = scmp.eq.s32.totalorder %s24, 1
      %p103 = por %p101, %p102
      %p105 = scmp.ne.s32.totalorder %s90, %s104
      %p106 = scmp.eq.s32.totalorder %s24, 0
      %p107 = por %p105, %p106
      %s108 = ssub.s32 %s25, %s37
      %s109 = ssub.s32 %s26, %s33
      %s110 = sor.u32 %s108, %s109
      %p111 = scmp.eq.s32.totalorder %s110, 0
      %s113 = sadd.s32 %s112, 1
      %s114 = scalar_select %p111, %s112, %s113
      %p117 = pneg %p111
      %p118 = scmp.eq.s32.totalorder %s18, 1
      %p119 = por %p117, %p118
      %p120 = scmp.ne.s32.totalorder %s112, %s115
      %p121 = scmp.eq.s32.totalorder %s18, 0
      %p122 = por %p120, %p121
      %p123 = scmp.ne.s32.totalorder %s112, %s115
      %p124 = scmp.eq.s32.totalorder %s23, 1
      %p125 = por %p123, %p124
      %p126 = scmp.ne.s32.totalorder %s115, %s116
      %p127 = scmp.eq.s32.totalorder %s23, 0
      %p128 = por %p126, %p127
      %p129 = scmp.ne.s32.totalorder %s115, %s116
      %p130 = scmp.eq.s32.totalorder %s24, 1
      %p131 = por %p129, %p130
      %p133 = scmp.ne.s32.totalorder %s116, %s132
      %p134 = scmp.eq.s32.totalorder %s24, 0
      %p135 = por %p133, %p134
      %s136 = ssub.s32 %s25, %s37
      %s137 = ssub.s32 %s26, %s33
      %s138 = sor.u32 %s136, %s137
      %p139 = scmp.eq.s32.totalorder %s138, 0
      %s141 = sadd.s32 %s140, 1
      %s142 = scalar_select %p139, %s140, %s141
      %p145 = pneg %p139
      %p146 = scmp.eq.s32.totalorder %s18, 1
      %p147 = por %p145, %p146
      %p148 = scmp.ne.s32.totalorder %s140, %s143
      %p149 = scmp.eq.s32.totalorder %s18, 0
      %p150 = por %p148, %p149
      %p151 = scmp.ne.s32.totalorder %s140, %s143
      %p152 = scmp.eq.s32.totalorder %s23, 1
      %p153 = por %p151, %p152
      %p154 = scmp.ne.s32.totalorder %s143, %s144
      %p155 = scmp.eq.s32.totalorder %s23, 0
      %p156 = por %p154, %p155
      %p157 = scmp.ne.s32.totalorder %s143, %s144
      %p158 = scmp.eq.s32.totalorder %s24, 1
      %p159 = por %p157, %p158
      %p161 = scmp.ne.s32.totalorder %s144, %s160
      %p162 = scmp.eq.s32.totalorder %s24, 0
      %p163 = por %p161, %p162
      %s164 = ssub.s32 %s25, %s37
      %s165 = ssub.s32 %s26, %s33
      %s166 = sor.u32 %s164, %s165
      %p167 = scmp.eq.s32.totalorder %s166, 0
      %s169 = sadd.s32 %s168, 1
      %s170 = scalar_select %p167, %s168, %s169
      %p173 = pneg %p167
      %p174 = scmp.eq.s32.totalorder %s18, 1
      %p175 = por %p173, %p174
      %p176 = scmp.ne.s32.totalorder %s168, %s171
      %p177 = scmp.eq.s32.totalorder %s18, 0
      %p178 = por %p176, %p177
      %p179 = scmp.ne.s32.totalorder %s168, %s171
      %p180 = scmp.eq.s32.totalorder %s23, 1
      %p181 = por %p179, %p180
      %p182 = scmp.ne.s32.totalorder %s171, %s172
      %p183 = scmp.eq.s32.totalorder %s23, 0
      %p184 = por %p182, %p183
      %p185 = scmp.ne.s32.totalorder %s171, %s172
      %p186 = scmp.eq.s32.totalorder %s24, 1
      %p187 = por %p185, %p186
      %p189 = scmp.ne.s32.totalorder %s172, %s188
      %p190 = scmp.eq.s32.totalorder %s24, 0
      %p191 = por %p189, %p190
      %p192 = scmp.le.s32.totalorder 1, %s18
      %p193 = scmp.lt.s32.totalorder %s18, 3
      %p194 = pnand %p192, %p193
      %p195 = pneg %p194
      // Predicated region
      $region9: #{tpu_custom_call.1} parent=5 // pred_check
        _
      $region10: #{tpu_custom_call.1} parent=5 // pred_check_branch
        %197 = sbr.rel (%p194) target = $region12
      $region11: #{tpu_custom_call.1} parent=5 // pred_region
        %s198 = ssub.s32 %s18, 1
        // Predicated region
        $region13: #{tpu_custom_call.1} parent=11 // pred_check
          %p199 = pneg %p79
        $region14: #{tpu_custom_call.1} parent=11 // pred_check_branch
          %201 = sbr.rel (%p199) target = $region16
        $region15: #{tpu_custom_call.1} parent=11 // pred_region
          _
        $region16: #{tpu_custom_call.1} parent=11 // pred_fallthru
          _
        // Predicated region
        $region17: #{tpu_custom_call.1} parent=11 // pred_check
          %p202 = pneg %p100
        $region18: #{tpu_custom_call.1} parent=11 // pred_check_branch
          %204 = sbr.rel (%p202) target = $region20
        $region19: #{tpu_custom_call.1} parent=11 // pred_region
          _
        $region20: #{tpu_custom_call.1} parent=11 // pred_fallthru
          _
      $region12: #{tpu_custom_call.1} parent=5 // pred_fallthru
        _
      %p205 = scmp.lt.s32.totalorder %s18, 2
      // Predicated region
      $region21: #{tpu_custom_call.1} parent=5 // pred_check
        %p206 = pneg %p205
      $region22: #{tpu_custom_call.1} parent=5 // pred_check_branch
        %208 = sbr.rel (%p206) target = $region24
      $region23: #{tpu_custom_call.1} parent=5 // pred_region
        // Predicated region
        $region25: #{tpu_custom_call.1} parent=23 // pred_check
          %p209 = pneg %p52
        $region26: #{tpu_custom_call.1} parent=23 // pred_check_branch
          %211 = sbr.rel (%p209) target = $region28
        $region27: #{tpu_custom_call.1} parent=23 // pred_region
          %p212 = scmp.lt.s32.totalorder %s25, 1
          %s213 = scalar_select %p212, %s25, 1
          %p214 = scmp.lt.s32.totalorder %s26, 0
          %s215 = scalar_select %p214, %s26, 0
          %s216 = sadd.s32 %s215, %s213
          %s217 = smul.addr %s216, 8
          %s218 = scalar_lea.vmem %s0, %s217
        $region28: #{tpu_custom_call.1} parent=23 // pred_fallthru
          _
      $region24: #{tpu_custom_call.1} parent=5 // pred_fallthru
        _
      %p219 = scmp.le.s32.totalorder 1, %s18
      %p220 = scmp.lt.s32.totalorder %s18, 3
      %p221 = pnand %p219, %p220
      %p222 = pneg %p221
      // Predicated region
      $region29: #{tpu_custom_call.1} parent=5 // pred_check
        _
      $region30: #{tpu_custom_call.1} parent=5 // pred_check_branch
        %224 = sbr.rel (%p221) target = $region32
      $region31: #{tpu_custom_call.1} parent=5 // pred_region
        %s225 = ssub.s32 %s18, 1
        %p226 = scmp.lt.s32.totalorder %s27, 1
        %s227 = scalar_select %p226, %s27, 1
        %p228 = scmp.lt.s32.totalorder %s28, 0
        %s229 = scalar_select %p228, %s28, 0
        %s230 = sadd.s32 %s229, %s227
        %s231 = smul.addr %s230, 8
        %s232 = scalar_lea.vmem %s0, %s231
        %p233 = pneg %p58
        %p234 = pneg %p55
        %p235 = pneg %p79
        %p236 = pneg %p76
        %p237 = pneg %p100
        %p238 = pneg %p97
        %p239 = pneg %p128
        %p240 = pneg %p125
        %s241 = sand.u32 %s115, 1
        %s242 = scalar_lea.sflag [#allocation3], %s241
        %s243 = sand.u32 %s115, 1
        %s244 = smul.addr %s243, 8
        %s245 = scalar_lea.vmem [#allocation2], %s244
        %p246 = pneg %p156
        %p247 = pneg %p153
        %s248 = sand.u32 %s23, 1
        %s249 = scalar_lea.sflag [#allocation5], %s248
        %s250 = sand.u32 %s143, 1
        %s251 = scalar_lea.vmem [#allocation4], %s250
        %p252 = pneg %p184
        %p253 = pneg %p181
        %s254 = sand.u32 %s23, 1
        %s255 = scalar_lea.sflag [#allocation5], %s254
        %s256 = sand.u32 %s171, 1
        %s257 = scalar_lea.vmem [#allocation6], %s256
        %p258 = scmp.lt.s32.totalorder %s27, 1
        %s259 = scalar_select %p258, %s27, 1
        %p260 = scmp.lt.s32.totalorder %s28, 0
        %s261 = scalar_select %p260, %s28, 0
        %s262 = sadd.s32 %s261, %s259
        %s263 = smul.addr %s262, 8
        %s264 = scalar_lea.vmem %s0, %s263
        %v265 = vld [vmem:[%s264] sm:$0xff]
        %v266 = vld [vmem:[%s1] sm:$0xff]
        %v267 = vld [vmem:[%s1 + $0x8] sm:$0xff]
        %v268 = vld [vmem:[%s1 + $0x10] sm:$0xff]
        %v269 = vld [vmem:[%s1 + $0x18] sm:$0xff]
        %v270 = vld [vmem:[%s1 + $0x20] sm:$0xff]
        %v271 = vld [vmem:[%s1 + $0x28] sm:$0xff]
        %v272 = vld [vmem:[%s1 + $0x30] sm:$0xff]
        %v273 = vld [vmem:[%s1 + $0x38] sm:$0xff]
        %v274 = vld [vmem:[%s1 + $0x40] sm:$0xff]
        %v275 = vld [vmem:[%s1 + $0x48] sm:$0xff]
        %v276 = vld [vmem:[%s1 + $0x50] sm:$0xff]
        %v277 = vld [vmem:[%s1 + $0x58] sm:$0xff]
        %v278 = vld [vmem:[%s1 + $0x60] sm:$0xff]
        %v279 = vld [vmem:[%s1 + $0x68] sm:$0xff]
        %v280 = vld [vmem:[%s1 + $0x70] sm:$0xff]
        %v281 = vld [vmem:[%s1 + $0x78] sm:$0xff]
        %vm282 = vcmask 64512
        %v284 = vsel %vm282, %v266, 0
        %v287 = vsel %vm282, %v267, 0
        %v290 = vsel %vm282, %v268, 0
        %v293 = vsel %vm282, %v269, 0
        %v296 = vsel %vm282, %v270, 0
        %v299 = vsel %vm282, %v271, 0
        %v302 = vsel %vm282, %v272, 0
        %v305 = vsel %vm282, %v273, 0
        %v308 = vsel %vm282, %v274, 0
        %v311 = vsel %vm282, %v275, 0
        %v314 = vsel %vm282, %v276, 0
        %v317 = vsel %vm282, %v277, 0
        %v320 = vsel %vm282, %v278, 0
        %v323 = vsel %vm282, %v279, 0
        %v326 = vsel %vm282, %v280, 0
        %v329 = vsel %vm282, %v281, 0
        %331 = vmatpush.msra.mxu0 0.0
        %332 = vmatpush.msra.mxu0 0.0
        %333 = vmatpush.msra.mxu0 0.0
        %334 = vmatpush.msra.mxu0 0.0
        %335 = vmatpush.msra.mxu0 0.0
        %336 = vmatpush.msra.mxu0 0.0
        %337 = vmatpush.msra.mxu0 0.0
        %338 = vmatpush.msra.mxu0 0.0
        %339 = vmatpush.msra.mxu0 0.0
        %340 = vmatpush.msra.mxu0 0.0
        %341 = vmatpush.msra.mxu0 0.0
        %342 = vmatpush.msra.mxu0 0.0
        %343 = vmatpush.msra.mxu0 0.0
        %344 = vmatpush.msra.mxu0 0.0
        %345 = vmatpush.msra.mxu0 0.0
        %346 = vmatpush.msra.mxu0 %v265
        %347 = vmatmul.f32.gmra.mxu0 %v284
        %v348 = vpop.f32.mrf.mxu0
        %v349 = vadd.f32 0.0, %v348
        %350 = vmatmul.f32.gmra.mxu0 %v287
        %v351 = vpop.f32.mrf.mxu0
        %v352 = vadd.f32 0.0, %v351
        %353 = vmatmul.f32.gmra.mxu0 %v290
        %v354 = vpop.f32.mrf.mxu0
        %v355 = vadd.f32 0.0, %v354
        %356 = vmatmul.f32.gmra.mxu0 %v293
        %v357 = vpop.f32.mrf.mxu0
        %v358 = vadd.f32 0.0, %v357
        %359 = vmatmul.f32.gmra.mxu0 %v296
        %v360 = vpop.f32.mrf.mxu0
        %v361 = vadd.f32 0.0, %v360
        %362 = vmatmul.f32.gmra.mxu0 %v299
        %v363 = vpop.f32.mrf.mxu0
        %v364 = vadd.f32 0.0, %v363
        %365 = vmatmul.f32.gmra.mxu0 %v302
        %v366 = vpop.f32.mrf.mxu0
        %v367 = vadd.f32 0.0, %v366
        %368 = vmatmul.f32.gmra.mxu0 %v305
        %v369 = vpop.f32.mrf.mxu0
        %v370 = vadd.f32 0.0, %v369
        %371 = vmatmul.f32.gmra.mxu0 %v308
        %v372 = vpop.f32.mrf.mxu0
        %v373 = vadd.f32 0.0, %v372
        %374 = vmatmul.f32.gmra.mxu0 %v311
        %v375 = vpop.f32.mrf.mxu0
        %v376 = vadd.f32 0.0, %v375
        %377 = vmatmul.f32.gmra.mxu0 %v314
        %v378 = vpop.f32.mrf.mxu0
        %v379 = vadd.f32 0.0, %v378
        %380 = vmatmul.f32.gmra.mxu0 %v317
        %v381 = vpop.f32.mrf.mxu0
        %v382 = vadd.f32 0.0, %v381
        %383 = vmatmul.f32.gmra.mxu0 %v320
        %v384 = vpop.f32.mrf.mxu0
        %v385 = vadd.f32 0.0, %v384
        %386 = vmatmul.f32.gmra.mxu0 %v323
        %v387 = vpop.f32.mrf.mxu0
        %v388 = vadd.f32 0.0, %v387
        %389 = vmatmul.f32.gmra.mxu0 %v326
        %v390 = vpop.f32.mrf.mxu0
        %v391 = vadd.f32 0.0, %v390
        %392 = vmatmul.f32.gmra.mxu0 %v329
        %v393 = vpop.f32.mrf.mxu0
        %v394 = vadd.f32 0.0, %v393
        %395 = vdwg.mxu0
        %v396 = vld [vmem:[%s2] sm:$0xff]
        %v397 = vld [vmem:[%s2 + $0x8] sm:$0xff]
        %v398 = vld [vmem:[%s2 + $0x10] sm:$0xff]
        %v399 = vld [vmem:[%s2 + $0x18] sm:$0xff]
        %v400 = vld [vmem:[%s2 + $0x20] sm:$0xff]
        %v401 = vld [vmem:[%s2 + $0x28] sm:$0xff]
        %v402 = vld [vmem:[%s2 + $0x30] sm:$0xff]
        %v403 = vld [vmem:[%s2 + $0x38] sm:$0xff]
        %v404 = vld [vmem:[%s2 + $0x40] sm:$0xff]
        %v405 = vld [vmem:[%s2 + $0x48] sm:$0xff]
        %v406 = vld [vmem:[%s2 + $0x50] sm:$0xff]
        %v407 = vld [vmem:[%s2 + $0x58] sm:$0xff]
        %v408 = vld [vmem:[%s2 + $0x60] sm:$0xff]
        %v409 = vld [vmem:[%s2 + $0x68] sm:$0xff]
        %v410 = vld [vmem:[%s2 + $0x70] sm:$0xff]
        %v411 = vld [vmem:[%s2 + $0x78] sm:$0xff]
        %413 = vset.pattern.permute.xlu0 0
        %414 = vperm.xlu0 %413, %v396
        %v415 = vpop.permute.xlu0 %414
        %418 = vset.pattern.permute.xlu0 0
        %419 = vperm.xlu0 %418, %v397
        %v420 = vpop.permute.xlu0 %419
        %423 = vset.pattern.permute.xlu0 0
        %424 = vperm.xlu0 %423, %v398
        %v425 = vpop.permute.xlu0 %424
        %428 = vset.pattern.permute.xlu0 0
        %429 = vperm.xlu0 %428, %v399
        %v430 = vpop.permute.xlu0 %429
        %433 = vset.pattern.permute.xlu0 0
        %434 = vperm.xlu0 %433, %v400
        %v435 = vpop.permute.xlu0 %434
        %438 = vset.pattern.permute.xlu0 0
        %439 = vperm.xlu0 %438, %v401
        %v440 = vpop.permute.xlu0 %439
        %443 = vset.pattern.permute.xlu0 0
        %444 = vperm.xlu0 %443, %v402
        %v445 = vpop.permute.xlu0 %444
        %448 = vset.pattern.permute.xlu0 0
        %449 = vperm.xlu0 %448, %v403
        %v450 = vpop.permute.xlu0 %449
        %453 = vset.pattern.permute.xlu0 0
        %454 = vperm.xlu0 %453, %v404
        %v455 = vpop.permute.xlu0 %454
        %458 = vset.pattern.permute.xlu0 0
        %459 = vperm.xlu0 %458, %v405
        %v460 = vpop.permute.xlu0 %459
        %463 = vset.pattern.permute.xlu0 0
        %464 = vperm.xlu0 %463, %v406
        %v465 = vpop.permute.xlu0 %464
        %468 = vset.pattern.permute.xlu0 0
        %469 = vperm.xlu0 %468, %v407
        %v470 = vpop.permute.xlu0 %469
        %473 = vset.pattern.permute.xlu0 0
        %474 = vperm.xlu0 %473, %v408
        %v475 = vpop.permute.xlu0 %474
        %478 = vset.pattern.permute.xlu0 0
        %479 = vperm.xlu0 %478, %v409
        %v480 = vpop.permute.xlu0 %479
        %483 = vset.pattern.permute.xlu0 0
        %484 = vperm.xlu0 %483, %v410
        %v485 = vpop.permute.xlu0 %484
        %488 = vset.pattern.permute.xlu0 0
        %489 = vperm.xlu0 %488, %v411
        %v490 = vpop.permute.xlu0 %489
        %v492 = vsub.f32 %v349, %v415
        %v493 = vsub.f32 %v352, %v420
        %v494 = vsub.f32 %v355, %v425
        %v495 = vsub.f32 %v358, %v430
        %v496 = vsub.f32 %v361, %v435
        %v497 = vsub.f32 %v364, %v440
        %v498 = vsub.f32 %v367, %v445
        %v499 = vsub.f32 %v370, %v450
        %v500 = vsub.f32 %v373, %v455
        %v501 = vsub.f32 %v376, %v460
        %v502 = vsub.f32 %v379, %v465
        %v503 = vsub.f32 %v382, %v470
        %v504 = vsub.f32 %v385, %v475
        %v505 = vsub.f32 %v388, %v480
        %v506 = vsub.f32 %v391, %v485
        %v507 = vsub.f32 %v394, %v490
        %v508 = vlaneseq
        %v509 = vshrl.u32 %v508, 7
        %v510 = vadd.s32 %v509, 8
        %v511 = vadd.s32 %v509, 16
        %v512 = vadd.s32 %v509, 24
        %v513 = vadd.s32 %v509, 32
        %v514 = vadd.s32 %v509, 40
        %v515 = vadd.s32 %v509, 48
        %v516 = vadd.s32 %v509, 56
        %v517 = vadd.s32 %v509, 64
        %v518 = vadd.s32 %v509, 72
        %v519 = vadd.s32 %v509, 80
        %v520 = vadd.s32 %v509, 88
        %v521 = vadd.s32 %v509, 96
        %v522 = vadd.s32 %v509, 104
        %v523 = vadd.s32 %v509, 112
        %v524 = vadd.s32 %v509, 120
        %v525 = vmax.f32 %v492, %v496
        %v526 = vmax.f32 %v493, %v497
        %v527 = vmax.f32 %v494, %v498
        %v528 = vmax.f32 %v495, %v499
        %v529 = vmax.f32 %v525, %v500
        %v530 = vmax.f32 %v526, %v501
        %v531 = vmax.f32 %v527, %v502
        %v532 = vmax.f32 %v528, %v503
        %v533 = vmax.f32 %v529, %v504
        %v534 = vmax.f32 %v530, %v505
        %v535 = vmax.f32 %v531, %v506
        %v536 = vmax.f32 %v532, %v507
        %v537 = vmax.f32 %v533, %v534
        %v538 = vmax.f32 %v535, %v536
        %v539 = vmax.f32 %v537, %v538
        %v540 = vrot.slane %v539, 4
        %v541 = vmax.f32 %v539, %v540
        %v542 = vrot.slane %v541, 2
        %v543 = vmax.f32 %v541, %v542
        %v544 = vrot.slane %v543, 1
        %v545 = vmax.f32 %v543, %v544
        %vm546 = vcmp.eq.f32.partialorder %v492, %v545
        %vm547 = vcmp.eq.f32.partialorder %v493, %v545
        %vm548 = vcmp.eq.f32.partialorder %v494, %v545
        %vm549 = vcmp.eq.f32.partialorder %v495, %v545
        %vm550 = vcmp.eq.f32.partialorder %v496, %v545
        %vm551 = vcmp.eq.f32.partialorder %v497, %v545
        %vm552 = vcmp.eq.f32.partialorder %v498, %v545
        %vm553 = vcmp.eq.f32.partialorder %v499, %v545
        %vm554 = vcmp.eq.f32.partialorder %v500, %v545
        %vm555 = vcmp.eq.f32.partialorder %v501, %v545
        %vm556 = vcmp.eq.f32.partialorder %v502, %v545
        %vm557 = vcmp.eq.f32.partialorder %v503, %v545
        %vm558 = vcmp.eq.f32.partialorder %v504, %v545
        %vm559 = vcmp.eq.f32.partialorder %v505, %v545
        %vm560 = vcmp.eq.f32.partialorder %v506, %v545
        %vm561 = vcmp.eq.f32.partialorder %v507, %v545
        %v562 = vsel %vm546, %v509, 128
        %v563 = vsel %vm547, %v510, 128
        %v564 = vsel %vm548, %v511, 128
        %v565 = vsel %vm549, %v512, 128
        %v566 = vsel %vm550, %v513, 128
        %v567 = vsel %vm551, %v514, 128
        %v568 = vsel %vm552, %v515, 128
        %v569 = vsel %vm553, %v516, 128
        %v570 = vsel %vm554, %v517, 128
        %v571 = vsel %vm555, %v518, 128
        %v572 = vsel %vm556, %v519, 128
        %v573 = vsel %vm557, %v520, 128
        %v574 = vsel %vm558, %v521, 128
        %v575 = vsel %vm559, %v522, 128
        %v576 = vsel %vm560, %v523, 128
        %v577 = vsel %vm561, %v524, 128
        %vm578 = vcmp.lt.s32.totalorder %v562, %v566
        %v579 = vsel %vm578, %v562, %v566
        %vm580 = vcmp.lt.s32.totalorder %v563, %v567
        %v581 = vsel %vm580, %v563, %v567
        %vm582 = vcmp.lt.s32.totalorder %v564, %v568
        %v583 = vsel %vm582, %v564, %v568
        %vm584 = vcmp.lt.s32.totalorder %v565, %v569
        %v585 = vsel %vm584, %v565, %v569
        %vm586 = vcmp.lt.s32.totalorder %v579, %v570
        %v587 = vsel %vm586, %v579, %v570
        %vm588 = vcmp.lt.s32.totalorder %v581, %v571
        %v589 = vsel %vm588, %v581, %v571
        %vm590 = vcmp.lt.s32.totalorder %v583, %v572
        %v591 = vsel %vm590, %v583, %v572
        %vm592 = vcmp.lt.s32.totalorder %v585, %v573
        %v593 = vsel %vm592, %v585, %v573
        %vm594 = vcmp.lt.s32.totalorder %v587, %v574
        %v595 = vsel %vm594, %v587, %v574
        %vm596 = vcmp.lt.s32.totalorder %v589, %v575
        %v597 = vsel %vm596, %v589, %v575
        %vm598 = vcmp.lt.s32.totalorder %v591, %v576
        %v599 = vsel %vm598, %v591, %v576
        %vm600 = vcmp.lt.s32.totalorder %v593, %v577
        %v601 = vsel %vm600, %v593, %v577
        %vm602 = vcmp.lt.s32.totalorder %v595, %v597
        %v603 = vsel %vm602, %v595, %v597
        %vm604 = vcmp.lt.s32.totalorder %v599, %v601
        %v605 = vsel %vm604, %v599, %v601
        %vm606 = vcmp.lt.s32.totalorder %v603, %v605
        %v607 = vsel %vm606, %v603, %v605
        %v608 = vrot.slane %v607, 4
        %vm609 = vcmp.lt.s32.totalorder %v607, %v608
        %v610 = vsel %vm609, %v607, %v608
        %v611 = vrot.slane %v610, 2
        %vm612 = vcmp.lt.s32.totalorder %v610, %v611
        %v613 = vsel %vm612, %v610, %v611
        %v614 = vrot.slane %v613, 1
        %vm615 = vcmp.lt.s32.totalorder %v613, %v614
        %v616 = vsel %vm615, %v613, %v614
        %617 = vst [vmem:[%s251] sm:$0x1] %v616
        %vm618 = vcmp.eq.s32.totalorder %v509, %v616
        %vm619 = vcmp.eq.s32.totalorder %v510, %v616
        %vm620 = vcmp.eq.s32.totalorder %v511, %v616
        %vm621 = vcmp.eq.s32.totalorder %v512, %v616
        %vm622 = vcmp.eq.s32.totalorder %v513, %v616
        %vm623 = vcmp.eq.s32.totalorder %v514, %v616
        %vm624 = vcmp.eq.s32.totalorder %v515, %v616
        %vm625 = vcmp.eq.s32.totalorder %v516, %v616
        %vm626 = vcmp.eq.s32.totalorder %v517, %v616
        %vm627 = vcmp.eq.s32.totalorder %v518, %v616
        %vm628 = vcmp.eq.s32.totalorder %v519, %v616
        %vm629 = vcmp.eq.s32.totalorder %v520, %v616
        %vm630 = vcmp.eq.s32.totalorder %v521, %v616
        %vm631 = vcmp.eq.s32.totalorder %v522, %v616
        %vm632 = vcmp.eq.s32.totalorder %v523, %v616
        %vm633 = vcmp.eq.s32.totalorder %v524, %v616
        %v634 = vsel %vm618, 1, 0
        %v635 = vsel %vm619, 1, 0
        %v636 = vsel %vm620, 1, 0
        %v637 = vsel %vm621, 1, 0
        %v638 = vsel %vm622, 1, 0
        %v639 = vsel %vm623, 1, 0
        %v640 = vsel %vm624, 1, 0
        %v641 = vsel %vm625, 1, 0
        %v642 = vsel %vm626, 1, 0
        %v643 = vsel %vm627, 1, 0
        %v644 = vsel %vm628, 1, 0
        %v645 = vsel %vm629, 1, 0
        %v646 = vsel %vm630, 1, 0
        %v647 = vsel %vm631, 1, 0
        %v648 = vsel %vm632, 1, 0
        %v649 = vsel %vm633, 1, 0
        %v650 = vcvt.s32.f32 %v634
        %v651 = vcvt.s32.f32 %v635
        %v652 = vcvt.s32.f32 %v636
        %v653 = vcvt.s32.f32 %v637
        %v654 = vcvt.s32.f32 %v638
        %v655 = vcvt.s32.f32 %v639
        %v656 = vcvt.s32.f32 %v640
        %v657 = vcvt.s32.f32 %v641
        %v658 = vcvt.s32.f32 %v642
        %v659 = vcvt.s32.f32 %v643
        %v660 = vcvt.s32.f32 %v644
        %v661 = vcvt.s32.f32 %v645
        %v662 = vcvt.s32.f32 %v646
        %v663 = vcvt.s32.f32 %v647
        %v664 = vcvt.s32.f32 %v648
        %v665 = vcvt.s32.f32 %v649
        %666 = vxpose.xlu0.b32.start [1/16] %v266, 128
        %667 = vxpose.xlu0.b32.cont [2/16] %v267, 128
        %668 = vxpose.xlu0.b32.cont [3/16] %v268, 128
        %669 = vxpose.xlu0.b32.cont [4/16] %v269, 128
        %670 = vxpose.xlu0.b32.cont [5/16] %v270, 128
        %671 = vxpose.xlu0.b32.cont [6/16] %v271, 128
        %672 = vxpose.xlu0.b32.cont [7/16] %v272, 128
        %673 = vxpose.xlu0.b32.cont [8/16] %v273, 128
        %674 = vxpose.xlu0.b32.cont [9/16] %v274, 128
        %675 = vxpose.xlu0.b32.cont [10/16] %v275, 128
        %676 = vxpose.xlu0.b32.cont [11/16] %v276, 128
        %677 = vxpose.xlu0.b32.cont [12/16] %v277, 128
        %678 = vxpose.xlu0.b32.cont [13/16] %v278, 128
        %679 = vxpose.xlu0.b32.cont [14/16] %v279, 128
        %680 = vxpose.xlu0.b32.cont [15/16] %v280, 128
        %681 = vxpose.xlu0.b32.end [16/16] %v281, 128
        %v682 = vpop.trf.xlu0
        %v683 = vpop.trf.xlu0
        %v684 = vpop.trf.xlu0
        %v685 = vpop.trf.xlu0
        %v686 = vpop.trf.xlu0
        %v687 = vpop.trf.xlu0
        %v688 = vpop.trf.xlu0
        %v689 = vpop.trf.xlu0
        %v690 = vpop.trf.xlu0
        %v691 = vpop.trf.xlu0
        %v692 = vpop.trf.xlu0
        %v693 = vpop.trf.xlu0
        %v694 = vpop.trf.xlu0
        %v695 = vpop.trf.xlu0
        %v696 = vpop.trf.xlu0
        %v697 = vpop.trf.xlu0
        %698 = vmatpush.msra.mxu0 %v665
        %699 = vmatpush.msra.mxu0 %v664
        %700 = vmatpush.msra.mxu0 %v663
        %701 = vmatpush.msra.mxu0 %v662
        %702 = vmatpush.msra.mxu0 %v661
        %703 = vmatpush.msra.mxu0 %v660
        %704 = vmatpush.msra.mxu0 %v659
        %705 = vmatpush.msra.mxu0 %v658
        %706 = vmatpush.msra.mxu0 %v657
        %707 = vmatpush.msra.mxu0 %v656
        %708 = vmatpush.msra.mxu0 %v655
        %709 = vmatpush.msra.mxu0 %v654
        %710 = vmatpush.msra.mxu0 %v653
        %711 = vmatpush.msra.mxu0 %v652
        %712 = vmatpush.msra.mxu0 %v651
        %713 = vmatpush.msra.mxu0 %v650
        %714 = vmatmul.f32.gmra.mxu0 %v682
        %v715 = vpop.f32.mrf.mxu0
        %v716 = vadd.f32 0.0, %v715
        %717 = vdwg.mxu0
        %718 = vst [vmem:[%s245] sm:$0xff] %v716
        %s719 = smul.u32 %s28, 128
        %v720 = vlaneseq
        %v721 = vand.u32 %v720, 127
        %v722 = vstv %s719
        %v723 = vadd.s32 %v722, %v721
        %vm724 = vcmp.lt.s32.totalorder %v723, 80
        %v725 = vsel %vm724, 1, 0
        %v726 = vcvt.s32.f32 %v725
        %727 = vmatpush.xpose.msra.mxu0 %v665
        %728 = vmatpush.xpose.msra.mxu0 %v664
        %729 = vmatpush.xpose.msra.mxu0 %v663
        %730 = vmatpush.xpose.msra.mxu0 %v662
        %731 = vmatpush.xpose.msra.mxu0 %v661
        %732 = vmatpush.xpose.msra.mxu0 %v660
        %733 = vmatpush.xpose.msra.mxu0 %v659
        %734 = vmatpush.xpose.msra.mxu0 %v658
        %735 = vmatpush.xpose.msra.mxu0 %v657
        %736 = vmatpush.xpose.msra.mxu0 %v656
        %737 = vmatpush.xpose.msra.mxu0 %v655
        %738 = vmatpush.xpose.msra.mxu0 %v654
        %739 = vmatpush.xpose.msra.mxu0 %v653
        %740 = vmatpush.xpose.msra.mxu0 %v652
        %741 = vmatpush.xpose.msra.mxu0 %v651
        %742 = vmatpush.xpose.msra.mxu0 %v650
        %743 = vmatmul.f32.gmra.mxu0 %v726
        %v744 = vpop.f32.mrf.mxu0
        %v745 = vadd.f32 0.0, %v744
        %746 = vdwg.mxu0
        %747 = vst [vmem:[%s257] sm:$0x1] %v745
        %s748 = sand.u32 %s115, 1
        %s749 = scalar_lea.sflag [#allocation3], %s748
        %s750 = sand.u32 %s115, 1
        %s751 = smul.addr %s750, 8
        %s752 = scalar_lea.vmem [#allocation2], %s751
        %s753 = sand.u32 %s23, 1
        %s754 = scalar_lea.sflag [#allocation5], %s753
        %s755 = sand.u32 %s143, 1
        %s756 = scalar_lea.vmem [#allocation4], %s755
        %s757 = sand.u32 %s23, 1
        %s758 = scalar_lea.sflag [#allocation5], %s757
        %s759 = sand.u32 %s171, 1
        %s760 = scalar_lea.vmem [#allocation6], %s759
        // Predicated region
        $region33: #{tpu_custom_call.1} parent=31 // pred_check
          %p761 = pneg %p125
        $region34: #{tpu_custom_call.1} parent=31 // pred_check_branch
          %763 = sbr.rel (%p761) target = $region36
        $region35: #{tpu_custom_call.1} parent=31 // pred_region
          %765 = vsyncadd %s749, 0
          %s766 = sadd.s32 %s28, %s27
          %s767 = smul.addr %s766, 8
          %s768 = scalar_lea.hbm %s3, %s767
          %s770 = sshll.u32 %s752, 4
          %s771 = int_to_ptr.vmem [resolvable:$true] %s770
          %s772 = sshll.u32 %s768, 4
          %s773 = int_to_ptr.hbm [resolvable:$true] %s772
          %775 = dma.vmem_to_hbm [thread:$0]  %s771, 128, %s773, %s749
        $region36: #{tpu_custom_call.1} parent=31 // pred_fallthru
          _
        // Predicated region
        $region37: #{tpu_custom_call.1} parent=31 // pred_check
          %p776 = pneg %p153
        $region38: #{tpu_custom_call.1} parent=31 // pred_check_branch
          %778 = sbr.rel (%p776) target = $region40
        $region39: #{tpu_custom_call.1} parent=31 // pred_region
          %780 = vsyncadd %s754, 0
          %s781 = sadd.s32 %s28, %s27
          %s782 = scalar_lea.hbm %s4, %s781
          %s784 = sshll.u32 %s756, 4
          %s785 = int_to_ptr.vmem [resolvable:$true] %s784
          %s786 = sshll.u32 %s782, 4
          %s787 = int_to_ptr.hbm [resolvable:$true] %s786
          %789 = dma.vmem_to_hbm [thread:$0]  %s785, 16, %s787, %s754
        $region40: #{tpu_custom_call.1} parent=31 // pred_fallthru
          _
        // Predicated region
        $region41: #{tpu_custom_call.1} parent=31 // pred_check
          %p790 = pneg %p181
        $region42: #{tpu_custom_call.1} parent=31 // pred_check_branch
          %792 = sbr.rel (%p790) target = $region44
        $region43: #{tpu_custom_call.1} parent=31 // pred_region
          %794 = vsyncadd %s758, 0
          %s795 = sadd.s32 %s28, %s27
          %s796 = scalar_lea.hbm %s5, %s795
          %s798 = sshll.u32 %s760, 4
          %s799 = int_to_ptr.vmem [resolvable:$true] %s798
          %s800 = sshll.u32 %s796, 4
          %s801 = int_to_ptr.hbm [resolvable:$true] %s800
          %803 = dma.vmem_to_hbm [thread:$0]  %s799, 16, %s801, %s758
        $region44: #{tpu_custom_call.1} parent=31 // pred_fallthru
          _
      $region32: #{tpu_custom_call.1} parent=5 // pred_fallthru
        _
      %p804 = scmp.le.s32.totalorder 2, %s18
      // Predicated region
      $region45: #{tpu_custom_call.1} parent=5 // pred_check
        %p805 = pneg %p804
      $region46: #{tpu_custom_call.1} parent=5 // pred_check_branch
        %807 = sbr.rel (%p805) target = $region48
      $region47: #{tpu_custom_call.1} parent=5 // pred_region
        %s808 = ssub.s32 %s18, 2
        // Predicated region
        $region49: #{tpu_custom_call.1} parent=47 // pred_check
          %p809 = pneg %p131
        $region50: #{tpu_custom_call.1} parent=47 // pred_check_branch
          %811 = sbr.rel (%p809) target = $region52
        $region51: #{tpu_custom_call.1} parent=47 // pred_region
          %s812 = sand.u32 %s116, 1
          %s813 = scalar_lea.sflag [#allocation3], %s812
          %s814 = sand.u32 %s116, 1
          %s815 = smul.addr %s814, 8
          %s816 = scalar_lea.vmem [#allocation2], %s815
          %818 = dma.done %s813, 128
        $region52: #{tpu_custom_call.1} parent=47 // pred_fallthru
          _
        // Predicated region
        $region53: #{tpu_custom_call.1} parent=47 // pred_check
          %p819 = pneg %p159
        $region54: #{tpu_custom_call.1} parent=47 // pred_check_branch
          %821 = sbr.rel (%p819) target = $region56
        $region55: #{tpu_custom_call.1} parent=47 // pred_region
          %s822 = sand.u32 %s24, 1
          %s823 = scalar_lea.sflag [#allocation5], %s822
          %s824 = sand.u32 %s144, 1
          %s825 = scalar_lea.vmem [#allocation4], %s824
          %827 = dma.done %s823, 16
        $region56: #{tpu_custom_call.1} parent=47 // pred_fallthru
          _
        // Predicated region
        $region57: #{tpu_custom_call.1} parent=47 // pred_check
          %p828 = pneg %p187
        $region58: #{tpu_custom_call.1} parent=47 // pred_check_branch
          %830 = sbr.rel (%p828) target = $region60
        $region59: #{tpu_custom_call.1} parent=47 // pred_region
          %s831 = sand.u32 %s24, 1
          %s832 = scalar_lea.sflag [#allocation5], %s831
          %s833 = sand.u32 %s172, 1
          %s834 = scalar_lea.vmem [#allocation6], %s833
          %836 = dma.done %s832, 16
        $region60: #{tpu_custom_call.1} parent=47 // pred_fallthru
          _
      $region48: #{tpu_custom_call.1} parent=5 // pred_fallthru
        _
    $region6: #{tpu_custom_call.1} parent=1 // loop_footer
      %s22 = sadd.s32 1, %s18
    $region7: #{tpu_custom_call.1} parent=1 // loop_footer_branch
      %17 = sbr.rel target = $region3
    $region8: #{tpu_custom_call.1} parent=1 // loop_exit
      _
    %837 = vsyncpa [#allocation3], 1
    %s838 = scalar_lea.sflag [#allocation3], 1
    %839 = vsyncpa %s838, 1
    %840 = vsyncpa [#allocation5], 1
    %s841 = scalar_lea.sflag [#allocation5], 1
    %842 = vsyncpa %s841, 1

</llo_original>
